<compile_context>
chip_gen: v7x
topology: tpu7x:2x2x1
jax: 0.10.0
libtpu: 0.0.40
codegen_flags: <defaults>
</compile_context>

<pallas_src>
import jax
import jax.numpy as jnp
from jax.experimental import pallas as pl
from jax.experimental.pallas import tpu as pltpu

LANE = 128


def mlp_kernel(xT_ref, w1T_ref, b1_ref, w2T_ref, b2_ref, w3_ref, b3_ref, o_ref):
    # xT_ref: (IN, TB) tile, batch on the lane axis.  Weights are VMEM-resident.
    xT = xT_ref[...]                                                        # (IN, TB)
    h1 = jnp.dot(w1T_ref[...], xT, preferred_element_type=jnp.float32)      # (H, TB) f32 acc
    h1 = jnp.maximum(h1 + b1_ref[...], 0.0)                                 # bias/ReLU in f32
    # Dropout -> identity in eval mode.
    h2 = jnp.dot(w2T_ref[...], h1.astype(w2T_ref.dtype),
                 preferred_element_type=jnp.float32)                        # (H, TB) f32 acc
    h2 = jnp.maximum(h2 + b2_ref[...], 0.0)
    # Final Linear(H -> 1): N=1 matmul replaced by a VPU multiply + sublane sum.
    out = jnp.sum(h2 * w3_ref[...], axis=0, keepdims=True) + b3_ref[0, 0]   # (1, TB)
    o_ref[...] = out


def _round_up(v, m):
    return -(-v // m) * m


def nn_forward(x, params, tb=512, matmul_dtype=jnp.bfloat16):
    """x: (B, 11) float32.  Returns (B, 1) float32."""
    w1, b1, w2, b2, w3, b3 = params      # w1 (IN,H), b1 (1,H), w2 (H,H), b2 (1,H), w3 (H,1), b3 (1,1)
    B, IN = x.shape
    H = w1.shape[1]

    # ---- batch-tile selection -------------------------------------------
    b_lanes = _round_up(B, LANE)
    tb_req = min(max(LANE, _round_up(tb, LANE)), 1024)     # 512-1024 sweet spot, cap vreg pressure
    if b_lanes >= 2 * LANE:
        # Keep >=2 grid steps so ("parallel",) can shard the batch across both
        # TensorCores on v7x (one extra ~0.35us step is negligible on v5e/v6e).
        TB = min(tb_req, (b_lanes // 2) // LANE * LANE)
    else:
        TB = b_lanes
    pad_b = _round_up(b_lanes, TB)
    grid = (pad_b // TB,)

    # ---- feature-major operands -----------------------------------------
    # MXU operands in `matmul_dtype` (default bf16, f32 accumulation in-kernel);
    # biases / w3 / epilogue stay f32.  The transpose+pad+cast of x is eligible
    # for input fusion into the pallas_call (allow_input_fusion below).
    xT = jnp.pad(x.T, ((0, 0), (0, pad_b - B))).astype(matmul_dtype)   # (IN, pad_b)
    w1T = w1.T.astype(matmul_dtype)                                    # (H, IN)
    w2T = w2.T.astype(matmul_dtype)                                    # (H, H)
    b1c = b1.T.astype(jnp.float32)                                     # (H, 1)
    b2c = b2.T.astype(jnp.float32)                                     # (H, 1)
    w3c = w3.astype(jnp.float32)                                       # (H, 1)
    b3c = b3.astype(jnp.float32)                                       # (1, 1) -> SMEM scalar

    flops = 2 * pad_b * (IN * H + H * H + H)
    bytes_accessed = (pad_b * IN * xT.dtype.itemsize          # x stream in
                      + pad_b * 4                              # output row
                      + w1T.size * w1T.dtype.itemsize
                      + w2T.size * w2T.dtype.itemsize
                      + (b1c.size + b2c.size + w3c.size + b3c.size) * 4)

    out = pl.pallas_call(
        mlp_kernel,
        out_shape=jax.ShapeDtypeStruct((1, pad_b), jnp.float32),
        grid=grid,
        in_specs=[
            pl.BlockSpec((IN, TB), lambda i: (0, i)),    # x tiles stream per grid step
            pl.BlockSpec((H, IN), lambda i: (0, 0)),     # W1^T resident
            pl.BlockSpec((H, 1), lambda i: (0, 0)),      # b1 resident
            pl.BlockSpec((H, H), lambda i: (0, 0)),      # W2^T resident
            pl.BlockSpec((H, 1), lambda i: (0, 0)),      # b2 resident
            pl.BlockSpec((H, 1), lambda i: (0, 0)),      # w3 resident
            pl.BlockSpec(memory_space=pltpu.MemorySpace.SMEM),   # b3 scalar in SMEM
        ],
        out_specs=pl.BlockSpec((1, TB), lambda i: (0, i)),       # lane-dense output row
        compiler_params=pltpu.CompilerParams(
            dimension_semantics=("parallel",),
            allow_input_fusion=[True, False, False, False, False, False, False],
        ),
        cost_estimate=pl.CostEstimate(
            flops=flops, transcendentals=0, bytes_accessed=bytes_accessed),
    )(xT, w1T, b1c, w2T, b2c, w3c, b3c)

    return out[:, :B].T                                  # back to (B, 1)


def init_params(key, in_dim=11, hidden=32, out_dim=1):
    # Deterministic init mimicking PyTorch's default U(-1/sqrt(fan_in), 1/sqrt(fan_in)).
    ks = jax.random.split(key, 6)

    def lin(kw, kb, fan_in, fan_out):
        bound = 1.0 / jnp.sqrt(fan_in)
        w = jax.random.uniform(kw, (fan_in, fan_out), jnp.float32, -bound, bound)
        b = jax.random.uniform(kb, (1, fan_out), jnp.float32, -bound, bound)
        return w, b

    w1, b1 = lin(ks[0], ks[1], in_dim, hidden)
    w2, b2 = lin(ks[2], ks[3], hidden, hidden)
    w3, b3 = lin(ks[4], ks[5], hidden, out_dim)
    return (w1, b1, w2, b2, w3, b3)


def _dot(a, b):
    return jnp.dot(a, b, precision=jax.lax.Precision.HIGHEST)


def nn_ref(x, params):
    """Pure-f32 reference (PyTorch eval-mode semantics)."""
    w1, b1, w2, b2, w3, b3 = params
    h1 = jnp.maximum(_dot(x, w1) + b1, 0.0)
    h2 = jnp.maximum(_dot(h1, w2) + b2, 0.0)
    return _dot(h2, w3) + b3


def nn_ref_bf16_operands(x, params):
    """Reference matching the kernel's bf16-operand / f32-accumulation math."""
    w1, b1, w2, b2, w3, b3 = params
    q = lambda a: a.astype(jnp.bfloat16).astype(jnp.float32)
    h1 = jnp.maximum(_dot(q(x), q(w1)) + b1, 0.0)
    h2 = jnp.maximum(_dot(q(h1), q(w2)) + b2, 0.0)
    return _dot(h2, w3) + b3


if __name__ == "__main__":
    key = jax.random.PRNGKey(0)
    k_x, k_p = jax.random.split(key)

    # config = {'hidden_layer_width': 32, 'dropout': 0.0}
    B, IN, H = 256, 11, 32
    x = jax.random.normal(k_x, (B, IN), dtype=jnp.float32)
    params = init_params(k_p, in_dim=IN, hidden=H, out_dim=1)

    # jit so the x transpose/pad/cast producer sits next to the pallas_call
    # and can fuse into its prologue (allow_input_fusion).
    fwd_bf16 = jax.jit(lambda xx, pp: nn_forward(xx, pp))                          # bf16 MXU operands
    fwd_f32 = jax.jit(lambda xx, pp: nn_forward(xx, pp, matmul_dtype=jnp.float32))  # exact f32 path

    out = jax.block_until_ready(fwd_bf16(x, params))        # B=256 -> TB=128, grid=(2,)
    out_f32 = jax.block_until_ready(fwd_f32(x, params))

    ref32 = nn_ref(x, params)
    refbf = nn_ref_bf16_operands(x, params)

    assert out.shape == (B, 1)
    assert out_f32.shape == (B, 1)
    # f32-operand kernel matches the pure-f32 reference tightly.
    assert jnp.allclose(out_f32, ref32, atol=1e-4, rtol=1e-4)
    # bf16-operand kernel matches the bf16-operand/f32-accumulation math tightly ...
    assert jnp.allclose(out, refbf, atol=5e-3, rtol=5e-3)
    # ... and the pure-f32 semantics within bf16 rounding of the inputs.
    assert jnp.allclose(out, ref32, atol=5e-2, rtol=5e-2)

    print("KERNEL_OK")
</pallas_src>

<mosaic_0001>
module attributes {stable_mosaic.version = 11 : i64} {
  func.func @mlp_kernel(%arg0: i32, %arg1: memref<11x128xbf16, #tpu.memory_space<vmem>>, %arg2: memref<32x11xbf16, #tpu.memory_space<vmem>>, %arg3: memref<32x1xf32, #tpu.memory_space<vmem>>, %arg4: memref<32x32xbf16, #tpu.memory_space<vmem>>, %arg5: memref<32x1xf32, #tpu.memory_space<vmem>>, %arg6: memref<32x1xf32, #tpu.memory_space<vmem>>, %arg7: memref<1x1xf32, #tpu.memory_space<smem>>, %arg8: memref<1x128xf32, #tpu.memory_space<vmem>>) attributes {dimension_semantics = [#tpu.dimension_semantics<parallel>], iteration_bounds = array<i64: 2>, scalar_prefetch = 0 : i64, scratch_operands = 0 : i64, tpu.core_type = #tpu.core_type<tc>, window_params = [{transform_indices = @transform_0, window_bounds = array<i64: 11, 128>}, {pipeline_mode = #tpu.pipeline_mode<synchronous>, transform_indices = @transform_1, window_bounds = array<i64: 32, 11>}, {pipeline_mode = #tpu.pipeline_mode<synchronous>, transform_indices = @transform_2, window_bounds = array<i64: 32, 1>}, {pipeline_mode = #tpu.pipeline_mode<synchronous>, transform_indices = @transform_3, window_bounds = array<i64: 32, 32>}, {pipeline_mode = #tpu.pipeline_mode<synchronous>, transform_indices = @transform_4, window_bounds = array<i64: 32, 1>}, {pipeline_mode = #tpu.pipeline_mode<synchronous>, transform_indices = @transform_5, window_bounds = array<i64: 32, 1>}, {transform_indices = @transform_6, window_bounds = array<i64: 1, 1>}, {transform_indices = @transform_7, window_bounds = array<i64: 1, 128>}]} {
    %c0 = arith.constant 0 : index
    %c0_0 = arith.constant 0 : index
    %0 = vector.load %arg1[%c0, %c0_0] : memref<11x128xbf16, #tpu.memory_space<vmem>>, vector<11x128xbf16>
    %c0_1 = arith.constant 0 : index
    %c0_2 = arith.constant 0 : index
    %1 = vector.load %arg2[%c0_1, %c0_2] : memref<32x11xbf16, #tpu.memory_space<vmem>>, vector<32x11xbf16>
    %cst = arith.constant dense<0.000000e+00> : vector<32x128xf32>
    %2 = tpu.matmul %1, %0, %cst {dimension_numbers = #tpu.dot_dimension_numbers<[1], [0], [0], [1], [0, 0, 1, 1], [], []>} : vector<32x11xbf16>, vector<11x128xbf16>, vector<32x128xf32> -> vector<32x128xf32>
    %c0_3 = arith.constant 0 : index
    %c0_4 = arith.constant 0 : index
    %3 = vector.load %arg3[%c0_3, %c0_4] : memref<32x1xf32, #tpu.memory_space<vmem>>, vector<32x1xf32>
    %4 = vector.broadcast %3 : vector<32x1xf32> to vector<32x128xf32>
    %5 = arith.addf %2, %4 : vector<32x128xf32>
    %cst_5 = arith.constant 0.000000e+00 : f32
    %6 = vector.broadcast %cst_5 : f32 to vector<32x128xf32>
    %7 = arith.maximumf %5, %6 : vector<32x128xf32>
    %c0_6 = arith.constant 0 : index
    %c0_7 = arith.constant 0 : index
    %8 = vector.load %arg4[%c0_6, %c0_7] : memref<32x32xbf16, #tpu.memory_space<vmem>>, vector<32x32xbf16>
    %9 = arith.truncf %7 : vector<32x128xf32> to vector<32x128xbf16>
    %cst_8 = arith.constant dense<0.000000e+00> : vector<32x128xf32>
    %10 = tpu.matmul %8, %9, %cst_8 {dimension_numbers = #tpu.dot_dimension_numbers<[1], [0], [0], [1], [0, 0, 1, 1], [], []>} : vector<32x32xbf16>, vector<32x128xbf16>, vector<32x128xf32> -> vector<32x128xf32>
    %c0_9 = arith.constant 0 : index
    %c0_10 = arith.constant 0 : index
    %11 = vector.load %arg5[%c0_9, %c0_10] : memref<32x1xf32, #tpu.memory_space<vmem>>, vector<32x1xf32>
    %12 = vector.broadcast %11 : vector<32x1xf32> to vector<32x128xf32>
    %13 = arith.addf %10, %12 : vector<32x128xf32>
    %cst_11 = arith.constant 0.000000e+00 : f32
    %14 = vector.broadcast %cst_11 : f32 to vector<32x128xf32>
    %15 = arith.maximumf %13, %14 : vector<32x128xf32>
    %c0_12 = arith.constant 0 : index
    %c0_13 = arith.constant 0 : index
    %16 = vector.load %arg6[%c0_12, %c0_13] : memref<32x1xf32, #tpu.memory_space<vmem>>, vector<32x1xf32>
    %17 = vector.broadcast %16 : vector<32x1xf32> to vector<32x128xf32>
    %18 = arith.mulf %15, %17 : vector<32x128xf32>
    %cst_14 = arith.constant dense<0.000000e+00> : vector<128xf32>
    %19 = vector.multi_reduction <add>, %18, %cst_14 [0] : vector<32x128xf32> to vector<128xf32>
    %20 = vector.shape_cast %19 : vector<128xf32> to vector<1x128xf32>
    %c0_15 = arith.constant 0 : index
    %c0_16 = arith.constant 0 : index
    %21 = memref.load %arg7[%c0_15, %c0_16] : memref<1x1xf32, #tpu.memory_space<smem>>
    %22 = vector.broadcast %21 : f32 to vector<1x128xf32>
    %23 = arith.addf %20, %22 : vector<1x128xf32>
    %c0_17 = arith.constant 0 : index
    %c0_18 = arith.constant 0 : index
    %24 = vector.load %arg8[%c0_17, %c0_18] : memref<1x128xf32, #tpu.memory_space<vmem>>, vector<1x128xf32>
    tpu.vector_store %arg8[%c0_17, %c0_18], %23 {strides = array<i32>} : memref<1x128xf32, #tpu.memory_space<vmem>>, vector<1x128xf32>,
    return
  }
  func.func @transform_0(%arg0: i32) -> (i32, i32) {
    %c0_i32 = arith.constant 0 : i32
    %c0_i32_0 = arith.constant 0 : i32
    return %c0_i32, %arg0 : i32, i32
  }
  func.func @transform_1(%arg0: i32) -> (i32, i32) {
    %c0_i32 = arith.constant 0 : i32
    %c0_i32_0 = arith.constant 0 : i32
    %c0_i32_1 = arith.constant 0 : i32
    return %c0_i32, %c0_i32_0 : i32, i32
  }
  func.func @transform_2(%arg0: i32) -> (i32, i32) {
    %c0_i32 = arith.constant 0 : i32
    %c0_i32_0 = arith.constant 0 : i32
    %c0_i32_1 = arith.constant 0 : i32
    return %c0_i32, %c0_i32_0 : i32, i32
  }
  func.func @transform_3(%arg0: i32) -> (i32, i32) {
    %c0_i32 = arith.constant 0 : i32
    %c0_i32_0 = arith.constant 0 : i32
    %c0_i32_1 = arith.constant 0 : i32
    return %c0_i32, %c0_i32_0 : i32, i32
  }
  func.func @transform_4(%arg0: i32) -> (i32, i32) {
    %c0_i32 = arith.constant 0 : i32
    %c0_i32_0 = arith.constant 0 : i32
    %c0_i32_1 = arith.constant 0 : i32
    return %c0_i32, %c0_i32_0 : i32, i32
  }
  func.func @transform_5(%arg0: i32) -> (i32, i32) {
    %c0_i32 = arith.constant 0 : i32
    %c0_i32_0 = arith.constant 0 : i32
    %c0_i32_1 = arith.constant 0 : i32
    return %c0_i32, %c0_i32_0 : i32, i32
  }
  func.func @transform_6(%arg0: i32) -> (i32, i32) {
    %c0_i32 = arith.constant 0 : i32
    %c0_i32_0 = arith.constant 0 : i32
    %c0_i32_1 = arith.constant 0 : i32
    return %c0_i32, %c0_i32_0 : i32, i32
  }
  func.func @transform_7(%arg0: i32) -> (i32, i32) {
    %c0_i32 = arith.constant 0 : i32
    %c0_i32_0 = arith.constant 0 : i32
    return %c0_i32, %arg0 : i32, i32
  }
}

</mosaic_0001>

<llo_original>
// kernel: _lambda_.2
$region0: #{_lambda_.2}
  #allocation0 [shape = 'u32[]', space=smem, size = 0x4, offset = 0x4, fixed_abs, tag = 'smem constant byte address 0x4 - core index']
  #allocation1 [shape = 'u32[144,128]{1,0:T(1,128)}', space=vmem, size = 0x12000, scoped, tag = 'internal scratch']
  #allocation2 [shape = 'f32[1,1]{1,0:T(1,128)S(6)}', space=smem, size = 0x200, scoped, tag = 'scoped memory for _lambda_.2']
  %s0 = inlined_call_operand.vmem [shape: bf16[32,11], index: 0, kind: input, shape index: {}]
  %s1 = inlined_call_operand.vmem [shape: f32[32,1], index: 1, kind: input, shape index: {}]
  %s2 = inlined_call_operand.vmem [shape: bf16[32,32], index: 2, kind: input, shape index: {}]
  %s3 = inlined_call_operand.vmem [shape: f32[32,1], index: 3, kind: input, shape index: {}]
  %s4 = inlined_call_operand.vmem [shape: f32[32,1], index: 4, kind: input, shape index: {}]
  %s5 = inlined_call_operand.<no memory space> [shape: f32[1,1], index: 5, kind: input, shape index: {}]
  %s6 = inlined_call_operand.vmem [shape: f32[256,11], index: 6, kind: input, shape index: {}]
  %s7 = inlined_call_operand.hbm [shape: f32[1,256], index: 7, kind: output, shape index: {}]
  %s8 = sld [smem:[#allocation0]]
  $region61: #{_lambda_.2} parent=0
    _
  %s10 = ssub.s32 1, %s8
  %s11 = scalar_select 0, %s10, %s8
  %12 = sst [smem:[#allocation2]] %s5
  $region1: #{_lambda_.2} parent=0
    #allocation3 [shape = 'u8[1024]{0}', space=vmem, size = 0x400, scoped, tag = 'output window, operand 0']
    #allocation4 [shape = 's32[2]{0}', space=sflag, size = 0x8, scoped, tag = 'scoped memory for _lambda_.2']
    %13 = vsyncpa [#allocation4], 0
    %s14 = scalar_lea.sflag [#allocation4], 1
    %15 = vsyncpa %s14, 0
    loop: start=0, step=1, limit=4
    $region2: #{_lambda_.2} parent=1 // loop_pre_header
      _
    $region3: #{_lambda_.2} parent=1 // loop_header
      %s17 = sphi 0, %s21
      %p18 = scmp.ge.s32.totalorder %s17, 4
      %s27 = sphi 0, %s29
      %s30 = sphi 0, %s27
      %s31 = sphi 0, %s30
      %s47 = sphi 0, %s31
      %s51 = sphi 0, %s51
      %s53 = sphi 0, %s51
      %s54 = sphi 0, %s53
      %s68 = sphi 0, %s54
      %s72 = sphi 0, %s72
      %s74 = sphi 0, %s72
      %s75 = sphi 0, %s74
      %s89 = sphi 0, %s75
      %s93 = sphi 0, %s93
      %s95 = sphi 0, %s93
      %s96 = sphi 0, %s95
      %s110 = sphi 0, %s96
      %s114 = sphi 0, %s114
      %s116 = sphi 0, %s114
      %s117 = sphi 0, %s116
      %s131 = sphi 0, %s117
      %s135 = sphi 0, %s135
      %s137 = sphi 0, %s135
      %s138 = sphi 0, %s137
      %s152 = sphi 0, %s138
      %s156 = sphi 0, %s156
      %s158 = sphi 0, %s156
      %s159 = sphi 0, %s158
      %s173 = sphi 0, %s159
      %s179 = sphi 0, %s181
      %s182 = sphi 0, %s179
      %s183 = sphi 0, %s182
      %s199 = sphi 0, %s183
    $region4: #{_lambda_.2} parent=1 // loop_header_branch
      %20 = sbr.rel (%p18) target = $region8
    $region5: #{_lambda_.2} parent=1 // loop_body
      %s22 = ssub.s32 %s17, 1
      %s23 = ssub.s32 %s17, 2
      %s24 = sadd.s32 %s17, 1
      %s25 = ssub.s32 %s17, %s24
      %p26 = scmp.eq.s32.totalorder %s25, 0
      %s28 = sadd.s32 %s27, 1
      %s29 = scalar_select %p26, %s27, %s28
      %p32 = pneg %p26
      %p33 = scmp.eq.s32.totalorder %s17, 1
      %p34 = por %p32, %p33
      %p35 = scmp.ne.s32.totalorder %s27, %s30
      %p36 = scmp.eq.s32.totalorder %s17, 0
      %p37 = por %p35, %p36
      %p38 = scmp.ne.s32.totalorder %s27, %s30
      %p39 = scmp.eq.s32.totalorder %s22, 1
      %p40 = por %p38, %p39
      %p41 = scmp.ne.s32.totalorder %s30, %s31
      %p42 = scmp.eq.s32.totalorder %s22, 0
      %p43 = por %p41, %p42
      %p44 = scmp.ne.s32.totalorder %s30, %s31
      %p45 = scmp.eq.s32.totalorder %s23, 1
      %p46 = por %p44, %p45
      %p48 = scmp.ne.s32.totalorder %s31, %s47
      %p49 = scmp.eq.s32.totalorder %s23, 0
      %p50 = por %p48, %p49
      %s52 = sadd.s32 %s51, 1
      %p55 = scmp.eq.s32.totalorder %s17, 1
      %p56 = scmp.ne.s32.totalorder %s51, %s53
      %p57 = scmp.eq.s32.totalorder %s17, 0
      %p58 = por %p56, %p57
      %p59 = scmp.ne.s32.totalorder %s51, %s53
      %p60 = scmp.eq.s32.totalorder %s22, 1
      %p61 = por %p59, %p60
      %p62 = scmp.ne.s32.totalorder %s53, %s54
      %p63 = scmp.eq.s32.totalorder %s22, 0
      %p64 = por %p62, %p63
      %p65 = scmp.ne.s32.totalorder %s53, %s54
      %p66 = scmp.eq.s32.totalorder %s23, 1
      %p67 = por %p65, %p66
      %p69 = scmp.ne.s32.totalorder %s54, %s68
      %p70 = scmp.eq.s32.totalorder %s23, 0
      %p71 = por %p69, %p70
      %s73 = sadd.s32 %s72, 1
      %p76 = scmp.eq.s32.totalorder %s17, 1
      %p77 = scmp.ne.s32.totalorder %s72, %s74
      %p78 = scmp.eq.s32.totalorder %s17, 0
      %p79 = por %p77, %p78
      %p80 = scmp.ne.s32.totalorder %s72, %s74
      %p81 = scmp.eq.s32.totalorder %s22, 1
      %p82 = por %p80, %p81
      %p83 = scmp.ne.s32.totalorder %s74, %s75
      %p84 = scmp.eq.s32.totalorder %s22, 0
      %p85 = por %p83, %p84
      %p86 = scmp.ne.s32.totalorder %s74, %s75
      %p87 = scmp.eq.s32.totalorder %s23, 1
      %p88 = por %p86, %p87
      %p90 = scmp.ne.s32.totalorder %s75, %s89
      %p91 = scmp.eq.s32.totalorder %s23, 0
      %p92 = por %p90, %p91
      %s94 = sadd.s32 %s93, 1
      %p97 = scmp.eq.s32.totalorder %s17, 1
      %p98 = scmp.ne.s32.totalorder %s93, %s95
      %p99 = scmp.eq.s32.totalorder %s17, 0
      %p100 = por %p98, %p99
      %p101 = scmp.ne.s32.totalorder %s93, %s95
      %p102 = scmp.eq.s32.totalorder %s22, 1
      %p103 = por %p101, %p102
      %p104 = scmp.ne.s32.totalorder %s95, %s96
      %p105 = scmp.eq.s32.totalorder %s22, 0
      %p106 = por %p104, %p105
      %p107 = scmp.ne.s32.totalorder %s95, %s96
      %p108 = scmp.eq.s32.totalorder %s23, 1
      %p109 = por %p107, %p108
      %p111 = scmp.ne.s32.totalorder %s96, %s110
      %p112 = scmp.eq.s32.totalorder %s23, 0
      %p113 = por %p111, %p112
      %s115 = sadd.s32 %s114, 1
      %p118 = scmp.eq.s32.totalorder %s17, 1
      %p119 = scmp.ne.s32.totalorder %s114, %s116
      %p120 = scmp.eq.s32.totalorder %s17, 0
      %p121 = por %p119, %p120
      %p122 = scmp.ne.s32.totalorder %s114, %s116
      %p123 = scmp.eq.s32.totalorder %s22, 1
      %p124 = por %p122, %p123
      %p125 = scmp.ne.s32.totalorder %s116, %s117
      %p126 = scmp.eq.s32.totalorder %s22, 0
      %p127 = por %p125, %p126
      %p128 = scmp.ne.s32.totalorder %s116, %s117
      %p129 = scmp.eq.s32.totalorder %s23, 1
      %p130 = por %p128, %p129
      %p132 = scmp.ne.s32.totalorder %s117, %s131
      %p133 = scmp.eq.s32.totalorder %s23, 0
      %p134 = por %p132, %p133
      %s136 = sadd.s32 %s135, 1
      %p139 = scmp.eq.s32.totalorder %s17, 1
      %p140 = scmp.ne.s32.totalorder %s135, %s137
      %p141 = scmp.eq.s32.totalorder %s17, 0
      %p142 = por %p140, %p141
      %p143 = scmp.ne.s32.totalorder %s135, %s137
      %p144 = scmp.eq.s32.totalorder %s22, 1
      %p145 = por %p143, %p144
      %p146 = scmp.ne.s32.totalorder %s137, %s138
      %p147 = scmp.eq.s32.totalorder %s22, 0
      %p148 = por %p146, %p147
      %p149 = scmp.ne.s32.totalorder %s137, %s138
      %p150 = scmp.eq.s32.totalorder %s23, 1
      %p151 = por %p149, %p150
      %p153 = scmp.ne.s32.totalorder %s138, %s152
      %p154 = scmp.eq.s32.totalorder %s23, 0
      %p155 = por %p153, %p154
      %s157 = sadd.s32 %s156, 1
      %p160 = scmp.eq.s32.totalorder %s17, 1
      %p161 = scmp.ne.s32.totalorder %s156, %s158
      %p162 = scmp.eq.s32.totalorder %s17, 0
      %p163 = por %p161, %p162
      %p164 = scmp.ne.s32.totalorder %s156, %s158
      %p165 = scmp.eq.s32.totalorder %s22, 1
      %p166 = por %p164, %p165
      %p167 = scmp.ne.s32.totalorder %s158, %s159
      %p168 = scmp.eq.s32.totalorder %s22, 0
      %p169 = por %p167, %p168
      %p170 = scmp.ne.s32.totalorder %s158, %s159
      %p171 = scmp.eq.s32.totalorder %s23, 1
      %p172 = por %p170, %p171
      %p174 = scmp.ne.s32.totalorder %s159, %s173
      %p175 = scmp.eq.s32.totalorder %s23, 0
      %p176 = por %p174, %p175
      %s177 = ssub.s32 %s17, %s24
      %p178 = scmp.eq.s32.totalorder %s177, 0
      %s180 = sadd.s32 %s179, 1
      %s181 = scalar_select %p178, %s179, %s180
      %p184 = pneg %p178
      %p185 = scmp.eq.s32.totalorder %s17, 1
      %p186 = por %p184, %p185
      %p187 = scmp.ne.s32.totalorder %s179, %s182
      %p188 = scmp.eq.s32.totalorder %s17, 0
      %p189 = por %p187, %p188
      %p190 = scmp.ne.s32.totalorder %s179, %s182
      %p191 = scmp.eq.s32.totalorder %s22, 1
      %p192 = por %p190, %p191
      %p193 = scmp.ne.s32.totalorder %s182, %s183
      %p194 = scmp.eq.s32.totalorder %s22, 0
      %p195 = por %p193, %p194
      %p196 = scmp.ne.s32.totalorder %s182, %s183
      %p197 = scmp.eq.s32.totalorder %s23, 1
      %p198 = por %p196, %p197
      %p200 = scmp.ne.s32.totalorder %s183, %s199
      %p201 = scmp.eq.s32.totalorder %s23, 0
      %p202 = por %p200, %p201
      %p203 = scmp.le.s32.totalorder 1, %s17
      %p204 = scmp.lt.s32.totalorder %s17, 3
      %p205 = pnand %p203, %p204
      %p206 = pneg %p205
      // Predicated region
      $region9: #{_lambda_.2} parent=5 // pred_check
        _
      $region10: #{_lambda_.2} parent=5 // pred_check_branch
        %208 = sbr.rel (%p205) target = $region12
      $region11: #{_lambda_.2} parent=5 // pred_region
        %s209 = ssub.s32 %s17, 1
        // Predicated region
        $region13: #{_lambda_.2} parent=11 // pred_check
          %p210 = pneg %p64
        $region14: #{_lambda_.2} parent=11 // pred_check_branch
          %212 = sbr.rel (%p210) target = $region16
        $region15: #{_lambda_.2} parent=11 // pred_region
          _
        $region16: #{_lambda_.2} parent=11 // pred_fallthru
          _
        // Predicated region
        $region17: #{_lambda_.2} parent=11 // pred_check
          %p213 = pneg %p85
        $region18: #{_lambda_.2} parent=11 // pred_check_branch
          %215 = sbr.rel (%p213) target = $region20
        $region19: #{_lambda_.2} parent=11 // pred_region
          _
        $region20: #{_lambda_.2} parent=11 // pred_fallthru
          _
        // Predicated region
        $region21: #{_lambda_.2} parent=11 // pred_check
          %p216 = pneg %p106
        $region22: #{_lambda_.2} parent=11 // pred_check_branch
          %218 = sbr.rel (%p216) target = $region24
        $region23: #{_lambda_.2} parent=11 // pred_region
          _
        $region24: #{_lambda_.2} parent=11 // pred_fallthru
          _
        // Predicated region
        $region25: #{_lambda_.2} parent=11 // pred_check
          %p219 = pneg %p127
        $region26: #{_lambda_.2} parent=11 // pred_check_branch
          %221 = sbr.rel (%p219) target = $region28
        $region27: #{_lambda_.2} parent=11 // pred_region
          _
        $region28: #{_lambda_.2} parent=11 // pred_fallthru
          _
        // Predicated region
        $region29: #{_lambda_.2} parent=11 // pred_check
          %p222 = pneg %p148
        $region30: #{_lambda_.2} parent=11 // pred_check_branch
          %224 = sbr.rel (%p222) target = $region32
        $region31: #{_lambda_.2} parent=11 // pred_region
          _
        $region32: #{_lambda_.2} parent=11 // pred_fallthru
          _
        // Predicated region
        $region33: #{_lambda_.2} parent=11 // pred_check
          %p225 = pneg %p169
        $region34: #{_lambda_.2} parent=11 // pred_check_branch
          %227 = sbr.rel (%p225) target = $region36
        $region35: #{_lambda_.2} parent=11 // pred_region
          _
        $region36: #{_lambda_.2} parent=11 // pred_fallthru
          _
      $region12: #{_lambda_.2} parent=5 // pred_fallthru
        _
      %p228 = scmp.lt.s32.totalorder %s17, 2
      // Predicated region
      $region37: #{_lambda_.2} parent=5 // pred_check
        %p229 = pneg %p228
      $region38: #{_lambda_.2} parent=5 // pred_check_branch
        %231 = sbr.rel (%p229) target = $region40
      $region39: #{_lambda_.2} parent=5 // pred_region
        // Predicated region
        $region41: #{_lambda_.2} parent=39 // pred_check
          %p232 = pneg %p37
        $region42: #{_lambda_.2} parent=39 // pred_check_branch
          %234 = sbr.rel (%p232) target = $region44
        $region43: #{_lambda_.2} parent=39 // pred_region
          %p235 = scmp.lt.s32.totalorder %s17, 1
          %s236 = scalar_select %p235, %s17, 1
          %s237 = smul.addr %s236, 8
          %s238 = scalar_lea.vmem %s6, %s237
        $region44: #{_lambda_.2} parent=39 // pred_fallthru
          _
      $region40: #{_lambda_.2} parent=5 // pred_fallthru
        _
      %p239 = scmp.le.s32.totalorder 1, %s17
      %p240 = scmp.lt.s32.totalorder %s17, 3
      %p241 = pnand %p239, %p240
      %p242 = pneg %p241
      // Predicated region
      $region45: #{_lambda_.2} parent=5 // pred_check
        _
      $region46: #{_lambda_.2} parent=5 // pred_check_branch
        %244 = sbr.rel (%p241) target = $region48
      $region47: #{_lambda_.2} parent=5 // pred_region
        #allocation5 [shape = 'u8[4096]{0}', space=vmem, size = 0x1000, dematerialized = true, scoped, tag = 'FusionAdapter Buffer %fusion.1 = bf16[11,256]{1,0:T(8,128)(2,1)} fusion(%param_6.2), kind=kLoop, calls=%fused_computation.1.clone, metadata={op_name="jit(<lambda>)/convert_element_type" stack_frame_id=11}']
        %s245 = ssub.s32 %s17, 1
        %p246 = scmp.lt.s32.totalorder %s22, 1
        %s247 = scalar_select %p246, %s22, 1
        %s248 = smul.addr %s247, 8
        %s249 = scalar_lea.vmem %s6, %s248
        %p250 = pneg %p43
        %p251 = pneg %p40
        %p252 = pneg %p64
        %p253 = pneg %p61
        %p254 = pneg %p85
        %p255 = pneg %p82
        %p256 = pneg %p106
        %p257 = pneg %p103
        %p258 = pneg %p127
        %p259 = pneg %p124
        %p260 = pneg %p148
        %p261 = pneg %p145
        %p262 = pneg %p169
        %p263 = pneg %p166
        %p264 = pneg %p195
        %p265 = pneg %p192
        %s266 = sand.u32 %s182, 1
        %s267 = scalar_lea.sflag [#allocation4], %s266
        %s268 = sand.u32 %s182, 1
        %s269 = scalar_lea.vmem [#allocation3], %s268
        %p270 = scmp.lt.s32.totalorder %s22, 1
        %s271 = scalar_select %p270, %s22, 1
        %s272 = smul.addr %s271, 8
        %s273 = scalar_lea.vmem %s6, %s272
        %v274 = vld [vmem:[%s273] sm:$0xff]
        %275 = xla_tuple %v274
        %276 = xla_tuple %275
        %277 = xla_tuple %v274
        %v278 = vpack.c.bf16 0.0, %v274
        %280 = vst [vmem:[#allocation5] sm:$0xf] %v278
        %s281 = scalar_lea.vmem %s273, 16
        %v282 = vld [vmem:[%s281] sm:$0xff]
        %283 = xla_tuple %v282
        %284 = xla_tuple %283
        %285 = xla_tuple %v282
        %s286 = scalar_lea.vmem [#allocation5], 4
        %v287 = vpack.c.bf16 0.0, %v282
        %289 = vst [vmem:[%s286] sm:$0xf] %v287
        %v291 = vld [vmem:[#allocation5] sm:$0xf]
        %v292 = vld [vmem:[#allocation5 + $0x4] sm:$0x3]
        %v293 = vld [vmem:[%s0] sm:$0xf]
        %v294 = vld [vmem:[%s0 + $0x4] sm:$0xf]
        %v295 = vld [vmem:[%s0 + $0x8] sm:$0xf]
        %v296 = vld [vmem:[%s0 + $0xc] sm:$0xf]
        %v297 = vld [vmem:[%s1] sm:$0xff]
        %v298 = vld [vmem:[%s1 + $0x8] sm:$0xff]
        %v299 = vld [vmem:[%s1 + $0x10] sm:$0xff]
        %v300 = vld [vmem:[%s1 + $0x18] sm:$0xff]
        %302 = vset.pattern.permute.xlu0 0
        %303 = vperm.xlu0 %302, %v297
        %v304 = vpop.permute.xlu0 %303
        %307 = vset.pattern.permute.xlu0 0
        %308 = vperm.xlu0 %307, %v298
        %v309 = vpop.permute.xlu0 %308
        %312 = vset.pattern.permute.xlu0 0
        %313 = vperm.xlu0 %312, %v299
        %v314 = vpop.permute.xlu0 %313
        %317 = vset.pattern.permute.xlu0 0
        %318 = vperm.xlu0 %317, %v300
        %v319 = vpop.permute.xlu0 %318
        %v325 = vunpack.c.l.b16 %v293
        %v326 = vunpack.c.l.b16 %v294
        %v327 = vunpack.c.l.b16 %v295
        %v328 = vunpack.c.l.b16 %v296
        %v329 = vpack.c.b16 %v326, %v325
        %v330 = vpack.c.b16 %v328, %v327
        %v333 = vunpack.c.l.b16 %v291
        %v334 = vunpack.c.l.b16 %v292
        %v335 = vpack.c.b16 %v334, %v333
        %vm336 = vcmask 89088
        %v338 = vsel %vm336, %v329, 0
        %v341 = vsel %vm336, %v330, 0
        %vm343 = vcmask 1044480
        %vm344 = vcmask 1045504
        %v345 = vsel %vm343, 4294967295, 65535
        %v346 = vsel %vm344, %v345, 0
        %v348 = vand.u32 %v335, %v346
        %350 = vmatprep.subr.bf16.mxu0 0
        %351 = vmatpush1.bf16.msra.mxu0 %v348
        %352 = vmatprep.subr.bf16.mxu0 0
        %353 = vmatpush1.bf16.msra.mxu0 0
        %354 = vmatprep.subr.bf16.mxu0 0
        %355 = vmatpush1.bf16.msra.mxu0 0
        %356 = vmatprep.subr.bf16.mxu0 0
        %357 = vmatpush1.bf16.msra.mxu0 0
        %358 = vmatprep.subr.bf16.mxu0 0
        %359 = vmatpush1.bf16.msra.mxu0 0
        %360 = vmatprep.subr.bf16.mxu0 0
        %361 = vmatpush1.bf16.msra.mxu0 0
        %362 = vmatprep.subr.bf16.mxu0 0
        %363 = vmatpush1.bf16.msra.mxu0 0
        %364 = vmatprep.subr.bf16.mxu0 0
        %365 = vmatpush1.bf16.msra.mxu0 0
        %366 = vmatprep.subr.bf16.mxu0 0
        %367 = vmatpush1.bf16.msra.mxu0 0
        %368 = vmatprep.subr.bf16.mxu0 0
        %369 = vmatpush1.bf16.msra.mxu0 0
        %370 = vmatprep.subr.bf16.mxu0 0
        %371 = vmatpush1.bf16.msra.mxu0 0
        %372 = vmatprep.subr.bf16.mxu0 0
        %373 = vmatpush1.bf16.msra.mxu0 0
        %374 = vmatprep.subr.bf16.mxu0 0
        %375 = vmatpush1.bf16.msra.mxu0 0
        %376 = vmatprep.subr.bf16.mxu0 0
        %377 = vmatpush1.bf16.msra.mxu0 0
        %378 = vmatprep.subr.bf16.mxu0 0
        %379 = vmatpush1.bf16.msra.mxu0 0
        %380 = vmatprep.subr.bf16.mxu0 0
        %381 = vmatpush1.bf16.msra.mxu0 0
        %382 = vmatprep.mubr.bf16.mxu0 0
        %383 = vmatmul.mubr.bf16.gmra.mrb[0].mxu0 %v338
        %v384 = vpop.f32.mrb[0].mxu0
        %v385 = vadd.f32 %v304, %v384
        %v386 = vpop.f32.mrb[0].mxu0
        %v387 = vpop.f32.mrb[0].mxu0
        %v388 = vadd.f32 %v309, %v387
        %v389 = vpop.f32.mrb[0].mxu0
        %390 = vmatprep.mubr.bf16.mxu0 0
        %391 = vmatmul.mubr.bf16.gmra.mrb[0].mxu0 %v341
        %v392 = vpop.f32.mrb[0].mxu0
        %v393 = vadd.f32 %v314, %v392
        %v394 = vpop.f32.mrb[0].mxu0
        %v395 = vpop.f32.mrb[0].mxu0
        %v396 = vadd.f32 %v319, %v395
        %v397 = vpop.f32.mrb[0].mxu0
        %398 = vdwg.mxu0
        %v399 = vmax.f32 %v385, 0.0
        %v400 = vmax.f32 %v388, 0.0
        %v401 = vmax.f32 %v393, 0.0
        %v402 = vmax.f32 %v396, 0.0
        %v403 = vld [vmem:[%s2] sm:$0xf]
        %v404 = vld [vmem:[%s2 + $0x4] sm:$0xf]
        %v405 = vld [vmem:[%s2 + $0x8] sm:$0xf]
        %v406 = vld [vmem:[%s2 + $0xc] sm:$0xf]
        %v407 = vpack.c.bf16 %v400, %v399
        %v408 = vpack.c.bf16 %v402, %v401
        %v409 = vld [vmem:[%s3] sm:$0xff]
        %v410 = vld [vmem:[%s3 + $0x8] sm:$0xff]
        %v411 = vld [vmem:[%s3 + $0x10] sm:$0xff]
        %v412 = vld [vmem:[%s3 + $0x18] sm:$0xff]
        %414 = vset.pattern.permute.xlu0 0
        %415 = vperm.xlu0 %414, %v409
        %v416 = vpop.permute.xlu0 %415
        %419 = vset.pattern.permute.xlu0 0
        %420 = vperm.xlu0 %419, %v410
        %v421 = vpop.permute.xlu0 %420
        %424 = vset.pattern.permute.xlu0 0
        %425 = vperm.xlu0 %424, %v411
        %v426 = vpop.permute.xlu0 %425
        %429 = vset.pattern.permute.xlu0 0
        %430 = vperm.xlu0 %429, %v412
        %v431 = vpop.permute.xlu0 %430
        %v437 = vunpack.c.l.b16 %v403
        %v438 = vunpack.c.l.b16 %v404
        %v439 = vunpack.c.l.b16 %v405
        %v440 = vunpack.c.l.b16 %v406
        %v441 = vpack.c.b16 %v438, %v437
        %v442 = vpack.c.b16 %v440, %v439
        %vm443 = vcmask 261120
        %v445 = vsel %vm443, %v441, 0
        %v448 = vsel %vm443, %v442, 0
        %450 = vmatprep.subr.bf16.mxu0 0
        %451 = vmatpush1.bf16.msra.mxu0 %v407
        %452 = vmatprep.subr.bf16.mxu0 0
        %453 = vmatpush1.bf16.msra.mxu0 %v408
        %454 = vmatprep.subr.bf16.mxu0 0
        %455 = vmatpush1.bf16.msra.mxu0 0
        %456 = vmatprep.subr.bf16.mxu0 0
        %457 = vmatpush1.bf16.msra.mxu0 0
        %458 = vmatprep.subr.bf16.mxu0 0
        %459 = vmatpush1.bf16.msra.mxu0 0
        %460 = vmatprep.subr.bf16.mxu0 0
        %461 = vmatpush1.bf16.msra.mxu0 0
        %462 = vmatprep.subr.bf16.mxu0 0
        %463 = vmatpush1.bf16.msra.mxu0 0
        %464 = vmatprep.subr.bf16.mxu0 0
        %465 = vmatpush1.bf16.msra.mxu0 0
        %466 = vmatprep.subr.bf16.mxu0 0
        %467 = vmatpush1.bf16.msra.mxu0 0
        %468 = vmatprep.subr.bf16.mxu0 0
        %469 = vmatpush1.bf16.msra.mxu0 0
        %470 = vmatprep.subr.bf16.mxu0 0
        %471 = vmatpush1.bf16.msra.mxu0 0
        %472 = vmatprep.subr.bf16.mxu0 0
        %473 = vmatpush1.bf16.msra.mxu0 0
        %474 = vmatprep.subr.bf16.mxu0 0
        %475 = vmatpush1.bf16.msra.mxu0 0
        %476 = vmatprep.subr.bf16.mxu0 0
        %477 = vmatpush1.bf16.msra.mxu0 0
        %478 = vmatprep.subr.bf16.mxu0 0
        %479 = vmatpush1.bf16.msra.mxu0 0
        %480 = vmatprep.subr.bf16.mxu0 0
        %481 = vmatpush1.bf16.msra.mxu0 0
        %482 = vmatprep.mubr.bf16.mxu0 0
        %483 = vmatmul.mubr.bf16.gmra.mrb[0].mxu0 %v445
        %v484 = vpop.f32.mrb[0].mxu0
        %v485 = vadd.f32 %v416, %v484
        %v486 = vpop.f32.mrb[0].mxu0
        %v487 = vpop.f32.mrb[0].mxu0
        %v488 = vadd.f32 %v421, %v487
        %v489 = vpop.f32.mrb[0].mxu0
        %490 = vmatprep.mubr.bf16.mxu0 0
        %491 = vmatmul.mubr.bf16.gmra.mrb[0].mxu0 %v448
        %v492 = vpop.f32.mrb[0].mxu0
        %v493 = vadd.f32 %v426, %v492
        %v494 = vpop.f32.mrb[0].mxu0
        %v495 = vpop.f32.mrb[0].mxu0
        %v496 = vadd.f32 %v431, %v495
        %v497 = vpop.f32.mrb[0].mxu0
        %498 = vdwg.mxu0
        %v499 = vmax.f32 %v485, 0.0
        %v500 = vmax.f32 %v488, 0.0
        %v501 = vmax.f32 %v493, 0.0
        %v502 = vmax.f32 %v496, 0.0
        %v503 = vld [vmem:[%s4] sm:$0xff]
        %v504 = vld [vmem:[%s4 + $0x8] sm:$0xff]
        %v505 = vld [vmem:[%s4 + $0x10] sm:$0xff]
        %v506 = vld [vmem:[%s4 + $0x18] sm:$0xff]
        %508 = vset.pattern.permute.xlu0 0
        %509 = vperm.xlu0 %508, %v503
        %v510 = vpop.permute.xlu0 %509
        %513 = vset.pattern.permute.xlu0 0
        %514 = vperm.xlu0 %513, %v504
        %v515 = vpop.permute.xlu0 %514
        %518 = vset.pattern.permute.xlu0 0
        %519 = vperm.xlu0 %518, %v505
        %v520 = vpop.permute.xlu0 %519
        %523 = vset.pattern.permute.xlu0 0
        %524 = vperm.xlu0 %523, %v506
        %v525 = vpop.permute.xlu0 %524
        %v527 = vmul.f32 %v499, %v510
        %v528 = vmul.f32 %v500, %v515
        %v529 = vmul.f32 %v501, %v520
        %v530 = vmul.f32 %v502, %v525
        %v531 = vadd.f32 %v527, %v528
        %v532 = vadd.f32 %v531, %v529
        %v533 = vadd.f32 %v532, %v530
        %v534 = vrot.slane %v533, 4
        %v535 = vadd.f32 %v533, %v534
        %v536 = vrot.slane %v535, 2
        %v537 = vadd.f32 %v535, %v536
        %v538 = vrot.slane %v537, 1
        %v539 = vadd.f32 %v537, %v538
        %s540 = sld [smem:[#allocation2]]
        %v541 = vstv %s540
        %v542 = vadd.f32 %v539, %v541
        %543 = vst [vmem:[%s269] sm:$0x1] %v542
        %s544 = sand.u32 %s182, 1
        %s545 = scalar_lea.sflag [#allocation4], %s544
        %s546 = sand.u32 %s182, 1
        %s547 = scalar_lea.vmem [#allocation3], %s546
        // Predicated region
        $region49: #{_lambda_.2} parent=47 // pred_check
          %p548 = pneg %p192
        $region50: #{_lambda_.2} parent=47 // pred_check_branch
          %550 = sbr.rel (%p548) target = $region52
        $region51: #{_lambda_.2} parent=47 // pred_region
          %s552 = ssub.s32 16, 16
          %553 = vsyncadd %s545, %s552
          %s554 = smul.addr %s22, 16
          %s555 = scalar_lea.hbm %s7, %s554
          %s557 = sshll.u32 %s547, 4
          %s558 = int_to_ptr.vmem [resolvable:$true] %s557
          %560 = dma.vmem_to_hbm [thread:$0]  %s558, 16, %s555, %s545
        $region52: #{_lambda_.2} parent=47 // pred_fallthru
          _
      $region48: #{_lambda_.2} parent=5 // pred_fallthru
        _
      %p561 = scmp.le.s32.totalorder 2, %s17
      // Predicated region
      $region53: #{_lambda_.2} parent=5 // pred_check
        %p562 = pneg %p561
      $region54: #{_lambda_.2} parent=5 // pred_check_branch
        %564 = sbr.rel (%p562) target = $region56
      $region55: #{_lambda_.2} parent=5 // pred_region
        %s565 = ssub.s32 %s17, 2
        // Predicated region
        $region57: #{_lambda_.2} parent=55 // pred_check
          %p566 = pneg %p198
        $region58: #{_lambda_.2} parent=55 // pred_check_branch
          %568 = sbr.rel (%p566) target = $region60
        $region59: #{_lambda_.2} parent=55 // pred_region
          %s569 = sand.u32 %s183, 1
          %s570 = scalar_lea.sflag [#allocation4], %s569
          %s571 = sand.u32 %s183, 1
          %s572 = scalar_lea.vmem [#allocation3], %s571
          %573 = dma.done %s570, 16
        $region60: #{_lambda_.2} parent=55 // pred_fallthru
          _
      $region56: #{_lambda_.2} parent=5 // pred_fallthru
        _
    $region6: #{_lambda_.2} parent=1 // loop_footer
      %s21 = sadd.s32 1, %s17
    $region7: #{_lambda_.2} parent=1 // loop_footer_branch
      %16 = sbr.rel target = $region3
    $region8: #{_lambda_.2} parent=1 // loop_exit
      _
    %574 = vsyncpa [#allocation4], 1
    %s575 = scalar_lea.sflag [#allocation4], 1
    %576 = vsyncpa %s575, 1

</llo_original>
